<compile_context>
chip_gen: v5e
topology: v5e:2x2
jax: 0.10.0
libtpu: 0.0.40
codegen_flags: <defaults>
</compile_context>

<pallas_src>
import jax
import jax.numpy as jnp
from jax.experimental import pallas as pl
from jax.experimental.pallas import tpu as pltpu

LANES = 128
ROW_ALIGN = 16  # bf16 output: keep second-minor block dim a multiple of 16


def _round_up(n, m):
    return ((n + m - 1) // m) * m


def _cdiv(a, b):
    return (a + b - 1) // b


def policy_kernel(x_ref, w1_ref, b1_ref, w2_ref, b2_ref, o_ref):
    # fc1 + ReLU  (bf16 MXU inputs, f32 accumulate, f32 elementwise)
    x = x_ref[...].astype(jnp.bfloat16)
    h = jnp.dot(x, w1_ref[...], preferred_element_type=jnp.float32)
    h = jnp.maximum(h + b1_ref[...], 0.0)                    # (TB,128)+(1,128)
    # fc2 (lane-dense: action_dim padded to 128 columns)
    logits = jnp.dot(h.astype(jnp.bfloat16), w2_ref[...],
                     preferred_element_type=jnp.float32)
    logits = logits + b2_ref[...]                            # pad cols ~ -1e30
    # numerically stable softmax in f32; pad columns underflow to exactly 0
    m = jnp.max(logits, axis=-1, keepdims=True)
    e = jnp.exp(logits - m)
    denom = jnp.sum(e, axis=-1, keepdims=True)
    probs = e * pl.reciprocal(denom, approx=True)            # EUP vrcp slot
    o_ref[...] = probs.astype(o_ref.dtype)                   # bf16 store


def make_policy(w1, b1, w2, b2, *, tb=1024, min_steps=1):
    """One-time weight prep + jitted forward: x (B,S) f32 -> probs (B,A) bf16.

    tb        : max rows per grid step (large tiles amortize per-step overhead
                on single-TC v5e/v6e).
    min_steps : set >= 2 (e.g. 4) on v7x so the "parallel" batch axis is
                sharded across both TensorCores even for small/medium B.
    """
    S, H = w1.shape
    _, A = w2.shape
    Np = _round_up(max(A, LANES), LANES)  # lane-dense padded fc2 width

    # Hoisted, truly one-time weight prep: bf16 weights, f32 biases, fc2 padded
    # to Np columns. Pad-bias is a finite -1e30 so f32 exp() underflows to 0
    # without NaNs (do not use -inf, do not move this into bf16).
    w1b = w1.astype(jnp.bfloat16)
    b1f = b1.reshape(1, H).astype(jnp.float32)
    w2b = jnp.pad(w2, ((0, 0), (0, Np - A))).astype(jnp.bfloat16)
    b2f = jnp.pad(b2.reshape(1, A).astype(jnp.float32),
                  ((0, 0), (0, Np - A)), constant_values=-1e30)

    # Weights/biases never change block index -> single VMEM buffer is enough.
    resident = dict(pipeline_mode=pl.Buffered(1))

    @jax.jit
    def _forward(x, w1b, b1f, w2b, b2f):
        B = x.shape[0]
        # Adaptive batch tile: pad at most ~one tile of rows, not up to tb-1.
        n_steps = max(_cdiv(B, tb), min_steps)
        TB = _round_up(_cdiv(B, n_steps), ROW_ALIGN)
        n_steps = _cdiv(B, TB)
        Bp = n_steps * TB
        xp = jnp.pad(x, ((0, Bp - B), (0, 0))) if Bp != B else x

        out = pl.pallas_call(
            policy_kernel,
            out_shape=jax.ShapeDtypeStruct((Bp, Np), jnp.bfloat16),
            grid=(n_steps,),
            in_specs=[
                pl.BlockSpec((TB, S), lambda i: (i, 0)),              # x tile
                pl.BlockSpec((S, H), lambda i: (0, 0), **resident),   # W1
                pl.BlockSpec((1, H), lambda i: (0, 0), **resident),   # b1
                pl.BlockSpec((H, Np), lambda i: (0, 0), **resident),  # W2 (padded)
                pl.BlockSpec((1, Np), lambda i: (0, 0), **resident),  # b2 (padded)
            ],
            out_specs=pl.BlockSpec((TB, Np), lambda i: (i, 0)),
            compiler_params=pltpu.CompilerParams(
                dimension_semantics=("parallel",),  # shards grid across TCs on v7x
            ),
        )(xp, w1b, b1f, w2b, b2f)
        return out[:B, :A]

    return lambda x: _forward(x, w1b, b1f, w2b, b2f)


def init_params(key, state_dim, action_dim, hidden=128):
    """PyTorch nn.Linear default init: U(-1/sqrt(fan_in), 1/sqrt(fan_in))."""
    k1, k2, k3, k4 = jax.random.split(key, 4)
    bound1 = 1.0 / jnp.sqrt(jnp.float32(state_dim))
    bound2 = 1.0 / jnp.sqrt(jnp.float32(hidden))
    # stored as (in, out) so the kernel does x @ W
    w1 = jax.random.uniform(k1, (state_dim, hidden), jnp.float32, -bound1, bound1)
    b1 = jax.random.uniform(k2, (1, hidden), jnp.float32, -bound1, bound1)
    w2 = jax.random.uniform(k3, (hidden, action_dim), jnp.float32, -bound2, bound2)
    b2 = jax.random.uniform(k4, (1, action_dim), jnp.float32, -bound2, bound2)
    return w1, b1, w2, b2


def _reference_bf16(x, w1, b1, w2, b2):
    """Same math path as the kernel (bf16 matmuls, f32 elementwise)."""
    h = jnp.dot(x.astype(jnp.bfloat16), w1.astype(jnp.bfloat16),
                preferred_element_type=jnp.float32) + b1
    h = jnp.maximum(h, 0.0)
    logits = jnp.dot(h.astype(jnp.bfloat16), w2.astype(jnp.bfloat16),
                     preferred_element_type=jnp.float32) + b2
    return jax.nn.softmax(logits, axis=-1)


def _reference_f32(x, w1, b1, w2, b2):
    h = jnp.maximum(x @ w1 + b1, 0.0)
    return jax.nn.softmax(h @ w2 + b2, axis=-1)


if __name__ == "__main__":
    key = jax.random.PRNGKey(0)
    kx, kx2, kp = jax.random.split(key, 3)

    state_dim = 16
    action_dim = 4
    w1, b1, w2, b2 = init_params(kp, state_dim, action_dim)
    policy = make_policy(w1, b1, w2, b2)

    # --- small batch (single grid step) ---
    batch = 8
    x = jax.random.normal(kx, (batch, state_dim), jnp.float32)
    probs = jax.block_until_ready(policy(x)).astype(jnp.float32)

    ref_bf16 = _reference_bf16(x, w1, b1, w2, b2)
    ref_f32 = _reference_f32(x, w1, b1, w2, b2)
    assert probs.shape == (batch, action_dim)
    assert jnp.allclose(probs, ref_bf16, atol=1e-2), "mismatch vs bf16 reference"
    assert jnp.allclose(probs, ref_f32, atol=3e-2), "mismatch vs f32 reference"
    assert jnp.allclose(jnp.sum(probs, axis=-1), 1.0, atol=2e-2)

    # --- larger, ragged batch (multi-step grid + adaptive-tile padding path) ---
    batch2 = 1037
    x2 = jax.random.normal(kx2, (batch2, state_dim), jnp.float32)
    probs2 = jax.block_until_ready(policy(x2)).astype(jnp.float32)
    ref2 = _reference_bf16(x2, w1, b1, w2, b2)
    assert probs2.shape == (batch2, action_dim)
    assert jnp.allclose(probs2, ref2, atol=1e-2), "mismatch vs bf16 reference (B=1037)"
    assert jnp.allclose(jnp.sum(probs2, axis=-1), 1.0, atol=2e-2)

    print("KERNEL_OK")
</pallas_src>

<mosaic_0001>
module attributes {stable_mosaic.version = 11 : i64} {
  func.func @policy_kernel(%arg0: i32, %arg1: memref<16x16xf32, #tpu.memory_space<vmem>>, %arg2: memref<16x128xbf16, #tpu.memory_space<vmem>>, %arg3: memref<1x128xf32, #tpu.memory_space<vmem>>, %arg4: memref<128x128xbf16, #tpu.memory_space<vmem>>, %arg5: memref<1x128xf32, #tpu.memory_space<vmem>>, %arg6: memref<16x128xbf16, #tpu.memory_space<vmem>>) attributes {dimension_semantics = [#tpu.dimension_semantics<parallel>], iteration_bounds = array<i64: 1>, scalar_prefetch = 0 : i64, scratch_operands = 0 : i64, tpu.core_type = #tpu.core_type<tc>, window_params = [{transform_indices = @transform_0, window_bounds = array<i64: 16, 16>}, {pipeline_mode = #tpu.pipeline_mode<synchronous>, transform_indices = @transform_1, window_bounds = array<i64: 16, 128>}, {pipeline_mode = #tpu.pipeline_mode<synchronous>, transform_indices = @transform_2, window_bounds = array<i64: 1, 128>}, {pipeline_mode = #tpu.pipeline_mode<synchronous>, transform_indices = @transform_3, window_bounds = array<i64: 128, 128>}, {pipeline_mode = #tpu.pipeline_mode<synchronous>, transform_indices = @transform_4, window_bounds = array<i64: 1, 128>}, {transform_indices = @transform_5, window_bounds = array<i64: 16, 128>}]} {
    %c0 = arith.constant 0 : index
    %c0_0 = arith.constant 0 : index
    %0 = vector.load %arg1[%c0, %c0_0] : memref<16x16xf32, #tpu.memory_space<vmem>>, vector<16x16xf32>
    %1 = arith.truncf %0 : vector<16x16xf32> to vector<16x16xbf16>
    %c0_1 = arith.constant 0 : index
    %c0_2 = arith.constant 0 : index
    %2 = vector.load %arg2[%c0_1, %c0_2] : memref<16x128xbf16, #tpu.memory_space<vmem>>, vector<16x128xbf16>
    %cst = arith.constant dense<0.000000e+00> : vector<16x128xf32>
    %3 = tpu.matmul %1, %2, %cst {dimension_numbers = #tpu.dot_dimension_numbers<[1], [0], [0], [1], [0, 0, 1, 1], [], []>} : vector<16x16xbf16>, vector<16x128xbf16>, vector<16x128xf32> -> vector<16x128xf32>
    %c0_3 = arith.constant 0 : index
    %c0_4 = arith.constant 0 : index
    %4 = vector.load %arg3[%c0_3, %c0_4] : memref<1x128xf32, #tpu.memory_space<vmem>>, vector<1x128xf32>
    %5 = vector.broadcast %4 : vector<1x128xf32> to vector<16x128xf32>
    %6 = arith.addf %3, %5 : vector<16x128xf32>
    %cst_5 = arith.constant 0.000000e+00 : f32
    %7 = vector.broadcast %cst_5 : f32 to vector<16x128xf32>
    %8 = arith.maximumf %6, %7 : vector<16x128xf32>
    %9 = arith.truncf %8 : vector<16x128xf32> to vector<16x128xbf16>
    %c0_6 = arith.constant 0 : index
    %c0_7 = arith.constant 0 : index
    %10 = vector.load %arg4[%c0_6, %c0_7] : memref<128x128xbf16, #tpu.memory_space<vmem>>, vector<128x128xbf16>
    %cst_8 = arith.constant dense<0.000000e+00> : vector<16x128xf32>
    %11 = tpu.matmul %9, %10, %cst_8 {dimension_numbers = #tpu.dot_dimension_numbers<[1], [0], [0], [1], [0, 0, 1, 1], [], []>} : vector<16x128xbf16>, vector<128x128xbf16>, vector<16x128xf32> -> vector<16x128xf32>
    %c0_9 = arith.constant 0 : index
    %c0_10 = arith.constant 0 : index
    %12 = vector.load %arg5[%c0_9, %c0_10] : memref<1x128xf32, #tpu.memory_space<vmem>>, vector<1x128xf32>
    %13 = vector.broadcast %12 : vector<1x128xf32> to vector<16x128xf32>
    %14 = arith.addf %11, %13 : vector<16x128xf32>
    %cst_11 = arith.constant dense<0xFF800000> : vector<16xf32>
    %15 = vector.multi_reduction <maximumf>, %14, %cst_11 [1] : vector<16x128xf32> to vector<16xf32>
    %16 = vector.shape_cast %15 : vector<16xf32> to vector<16x1xf32>
    %17 = vector.broadcast %16 : vector<16x1xf32> to vector<16x128xf32>
    %18 = arith.subf %14, %17 : vector<16x128xf32>
    %19 = math.exp %18 : vector<16x128xf32>
    %cst_12 = arith.constant dense<0.000000e+00> : vector<16xf32>
    %20 = vector.multi_reduction <add>, %19, %cst_12 [1] : vector<16x128xf32> to vector<16xf32>
    %21 = vector.shape_cast %20 : vector<16xf32> to vector<16x1xf32>
    %22 = tpu.reciprocal %21 {approx = true} : vector<16x1xf32> -> vector<16x1xf32>
    %23 = vector.broadcast %22 : vector<16x1xf32> to vector<16x128xf32>
    %24 = arith.mulf %19, %23 : vector<16x128xf32>
    %25 = arith.truncf %24 : vector<16x128xf32> to vector<16x128xbf16>
    %c0_13 = arith.constant 0 : index
    %c0_14 = arith.constant 0 : index
    %26 = vector.load %arg6[%c0_13, %c0_14] : memref<16x128xbf16, #tpu.memory_space<vmem>>, vector<16x128xbf16>
    tpu.vector_store %arg6[%c0_13, %c0_14], %25 {strides = array<i32>} : memref<16x128xbf16, #tpu.memory_space<vmem>>, vector<16x128xbf16>,
    return
  }
  func.func @transform_0(%arg0: i32) -> (i32, i32) {
    %c0_i32 = arith.constant 0 : i32
    %c0_i32_0 = arith.constant 0 : i32
    return %arg0, %c0_i32 : i32, i32
  }
  func.func @transform_1(%arg0: i32) -> (i32, i32) {
    %c0_i32 = arith.constant 0 : i32
    %c0_i32_0 = arith.constant 0 : i32
    %c0_i32_1 = arith.constant 0 : i32
    return %c0_i32, %c0_i32_0 : i32, i32
  }
  func.func @transform_2(%arg0: i32) -> (i32, i32) {
    %c0_i32 = arith.constant 0 : i32
    %c0_i32_0 = arith.constant 0 : i32
    %c0_i32_1 = arith.constant 0 : i32
    return %c0_i32, %c0_i32_0 : i32, i32
  }
  func.func @transform_3(%arg0: i32) -> (i32, i32) {
    %c0_i32 = arith.constant 0 : i32
    %c0_i32_0 = arith.constant 0 : i32
    %c0_i32_1 = arith.constant 0 : i32
    return %c0_i32, %c0_i32_0 : i32, i32
  }
  func.func @transform_4(%arg0: i32) -> (i32, i32) {
    %c0_i32 = arith.constant 0 : i32
    %c0_i32_0 = arith.constant 0 : i32
    %c0_i32_1 = arith.constant 0 : i32
    return %c0_i32, %c0_i32_0 : i32, i32
  }
  func.func @transform_5(%arg0: i32) -> (i32, i32) {
    %c0_i32 = arith.constant 0 : i32
    %c0_i32_0 = arith.constant 0 : i32
    return %arg0, %c0_i32 : i32, i32
  }
}

</mosaic_0001>

<llo_original>
// kernel: _forward.1
$region0: #{_forward.1}
  #allocation0 [shape = 'u32[]', space=smem, size = 0x4, offset = 0x4, fixed_abs, tag = 'smem constant byte address 0x4 - core index']
  #allocation1 [shape = 'u32[72,128]{1,0:T(1,128)}', space=vmem, size = 0x9000, scoped, tag = 'internal scratch']
  %s0 = inlined_call_operand.vmem [shape: f32[16,16], index: 0, kind: input, shape index: {}]
  %s1 = inlined_call_operand.vmem [shape: bf16[16,128], index: 1, kind: input, shape index: {}]
  %s2 = inlined_call_operand.vmem [shape: f32[1,128], index: 2, kind: input, shape index: {}]
  %s3 = inlined_call_operand.hbm [shape: bf16[128,128], index: 3, kind: input, shape index: {}]
  %s4 = inlined_call_operand.vmem [shape: f32[1,128], index: 4, kind: input, shape index: {}]
  %s5 = inlined_call_operand.vmem [shape: bf16[16,128], index: 5, kind: output, shape index: {}]
  %s6 = sld [smem:[#allocation0]]
  $region34: #{_forward.1} parent=0
    _
  %s8 = ssub.s32 1, %s6
  %s9 = scalar_select 0, %s8, %s6
  $region1: #{_forward.1} parent=0
    #allocation2 [shape = 'u8[32768]{0}', space=vmem, size = 0x8000, scoped, tag = 'input window, operand 3, single buffered']
    #allocation3 [shape = 's32[1]{0}', space=sflag, size = 0x4, scoped, tag = 'scoped memory for _forward.1']
    %10 = vsyncpa [#allocation3], 0
    // Predicated region
    $region2: #{_forward.1} parent=1 // pred_check
      _
    $region3: #{_forward.1} parent=1 // pred_check_branch
      %12 = sbr.rel (0) target = $region5
    $region4: #{_forward.1} parent=1 // pred_region
      _
    $region5: #{_forward.1} parent=1 // pred_fallthru
      _
    // Predicated region
    $region6: #{_forward.1} parent=1 // pred_check
      _
    $region7: #{_forward.1} parent=1 // pred_check_branch
      %14 = sbr.rel (0) target = $region9
    $region8: #{_forward.1} parent=1 // pred_region
      _
    $region9: #{_forward.1} parent=1 // pred_fallthru
      _
    // Predicated region
    $region10: #{_forward.1} parent=1 // pred_check
      _
    $region11: #{_forward.1} parent=1 // pred_check_branch
      %16 = sbr.rel (0) target = $region13
    $region12: #{_forward.1} parent=1 // pred_region
      _
    $region13: #{_forward.1} parent=1 // pred_fallthru
      _
    // Predicated region
    $region14: #{_forward.1} parent=1 // pred_check
      _
    $region15: #{_forward.1} parent=1 // pred_check_branch
      %18 = sbr.rel (0) target = $region17
    $region16: #{_forward.1} parent=1 // pred_region
      %20 = vsyncadd [#allocation3], 0
      %s21 = sshll.u32 %s3, 4
      %s22 = int_to_ptr.hbm [resolvable:$true] %s21
      %s23 = sshll.u32 [#allocation2], 4
      %s24 = int_to_ptr.vmem [resolvable:$true] %s23
      %29 = dma.hbm_to_vmem [thread:$0]  %s22, 1024, %s24, [#allocation3], 64, 64, 4
    $region17: #{_forward.1} parent=1 // pred_fallthru
      _
    // Predicated region
    $region18: #{_forward.1} parent=1 // pred_check
      _
    $region19: #{_forward.1} parent=1 // pred_check_branch
      %31 = sbr.rel (0) target = $region21
    $region20: #{_forward.1} parent=1 // pred_region
      _
    $region21: #{_forward.1} parent=1 // pred_fallthru
      _
    // Predicated region
    $region22: #{_forward.1} parent=1 // pred_check
      _
    $region23: #{_forward.1} parent=1 // pred_check_branch
      %33 = sbr.rel (0) target = $region25
    $region24: #{_forward.1} parent=1 // pred_region
      %35 = dma.done [#allocation3], 1024
    $region25: #{_forward.1} parent=1 // pred_fallthru
      _
    %v37 = vld [vmem:[%s0] sm:$0xff]
    %v38 = vld [vmem:[%s0 + $0x8] sm:$0xff]
    %v39 = vpack.c.bf16 %v38, %v37
    %v40 = vld [vmem:[%s1] sm:$0xf]
    %v41 = vld [vmem:[%s1 + $0x4] sm:$0xf]
    %v42 = vld [vmem:[%s2] sm:$0x1]
    %v44 = vperm.slane %v42, 0
    %v48 = vunpack.c.l.b16 %v40
    %v49 = vunpack.c.l.b16 %v41
    %v50 = vpack.c.b16 %v49, %v48
    %vm52 = vcmask 130048
    %v54 = vsel %vm52, %v39, 0
    %56 = vmatpush.bf16.msra.mxu0 0
    %57 = vmatpush.bf16.msra.mxu0 0
    %58 = vmatpush.bf16.msra.mxu0 0
    %59 = vmatpush.bf16.msra.mxu0 0
    %60 = vmatpush.bf16.msra.mxu0 0
    %61 = vmatpush.bf16.msra.mxu0 0
    %62 = vmatpush.bf16.msra.mxu0 0
    %63 = vmatpush.bf16.msra.mxu0 %v50
    %64 = vmatmul.bf16.gmra.mxu0 %v54
    %v65 = vpop.f32.mrf.mxu0
    %v66 = vadd.f32 %v44, %v65
    %v67 = vpop.f32.mrf.mxu0
    %v68 = vadd.f32 %v44, %v67
    %69 = vdwg.mxu0
    %v70 = vmax.f32 %v66, 0.0
    %v71 = vmax.f32 %v68, 0.0
    %v72 = vpack.c.bf16 %v71, %v70
    %v73 = vld [vmem:[#allocation2] sm:$0xf]
    %v74 = vld [vmem:[#allocation2 + $0x4] sm:$0xf]
    %v75 = vld [vmem:[#allocation2 + $0x8] sm:$0xf]
    %v76 = vld [vmem:[#allocation2 + $0xc] sm:$0xf]
    %v77 = vld [vmem:[#allocation2 + $0x10] sm:$0xf]
    %v78 = vld [vmem:[#allocation2 + $0x14] sm:$0xf]
    %v79 = vld [vmem:[#allocation2 + $0x18] sm:$0xf]
    %v80 = vld [vmem:[#allocation2 + $0x1c] sm:$0xf]
    %v81 = vld [vmem:[#allocation2 + $0x20] sm:$0xf]
    %v82 = vld [vmem:[#allocation2 + $0x24] sm:$0xf]
    %v83 = vld [vmem:[#allocation2 + $0x28] sm:$0xf]
    %v84 = vld [vmem:[#allocation2 + $0x2c] sm:$0xf]
    %v85 = vld [vmem:[#allocation2 + $0x30] sm:$0xf]
    %v86 = vld [vmem:[#allocation2 + $0x34] sm:$0xf]
    %v87 = vld [vmem:[#allocation2 + $0x38] sm:$0xf]
    %v88 = vld [vmem:[#allocation2 + $0x3c] sm:$0xf]
    %v89 = vld [vmem:[%s4] sm:$0x1]
    %v91 = vperm.slane %v89, 0
    %v109 = vunpack.c.l.b16 %v73
    %v110 = vunpack.c.l.b16 %v74
    %v111 = vunpack.c.l.b16 %v75
    %v112 = vunpack.c.l.b16 %v76
    %v113 = vunpack.c.l.b16 %v77
    %v114 = vunpack.c.l.b16 %v78
    %v115 = vunpack.c.l.b16 %v79
    %v116 = vunpack.c.l.b16 %v80
    %v117 = vunpack.c.l.b16 %v81
    %v118 = vunpack.c.l.b16 %v82
    %v119 = vunpack.c.l.b16 %v83
    %v120 = vunpack.c.l.b16 %v84
    %v121 = vunpack.c.l.b16 %v85
    %v122 = vunpack.c.l.b16 %v86
    %v123 = vunpack.c.l.b16 %v87
    %v124 = vunpack.c.l.b16 %v88
    %v125 = vpack.c.b16 %v110, %v109
    %v126 = vpack.c.b16 %v112, %v111
    %v127 = vpack.c.b16 %v114, %v113
    %v128 = vpack.c.b16 %v116, %v115
    %v129 = vpack.c.b16 %v118, %v117
    %v130 = vpack.c.b16 %v120, %v119
    %v131 = vpack.c.b16 %v122, %v121
    %v132 = vpack.c.b16 %v124, %v123
    %141 = vmatpush.bf16.msra.mxu0 %v132
    %142 = vmatpush.bf16.msra.mxu0 %v131
    %143 = vmatpush.bf16.msra.mxu0 %v130
    %144 = vmatpush.bf16.msra.mxu0 %v129
    %145 = vmatpush.bf16.msra.mxu0 %v128
    %146 = vmatpush.bf16.msra.mxu0 %v127
    %147 = vmatpush.bf16.msra.mxu0 %v126
    %148 = vmatpush.bf16.msra.mxu0 %v125
    %149 = vmatmul.bf16.gmra.mxu0 %v72
    %v150 = vpop.f32.mrf.mxu0
    %v151 = vadd.f32 %v91, %v150
    %v152 = vpop.f32.mrf.mxu0
    %v153 = vadd.f32 %v91, %v152
    %154 = vdwg.mxu0
    %155 = vmax.xlane.f32.xlu0 %v151
    %v156 = vpop.xlane.xlu0 %155
    %157 = vmax.xlane.f32.xlu0 %v153
    %v158 = vpop.xlane.xlu0 %157
    %v159 = vsub.f32 %v151, %v156
    %v160 = vsub.f32 %v153, %v158
    %v161 = vmul.f32 %v159, 1.442695
    %v162 = vpow.pop %v161
    %v163 = vmul.f32 %v160, 1.442695
    %v164 = vpow.pop %v163
    %165 = vadd.xlane.f32.xlu0 %v162
    %v166 = vpop.xlane.xlu0 %165
    %167 = vadd.xlane.f32.xlu0 %v164
    %v168 = vpop.xlane.xlu0 %167
    %v169 = vrcp.pop %v166
    %v170 = vrcp.pop %v168
    %v171 = vmul.f32 %v162, %v169
    %v172 = vmul.f32 %v164, %v170
    %v173 = vpack.c.bf16 %v171, %v171
    %v174 = vpack.c.bf16 %v172, %v172
    %175 = vst [vmem:[%s5] sm:$0xf] %v173
    %176 = vst [vmem:[%s5 + $0x4] sm:$0xf] %v174
    // Predicated region
    $region26: #{_forward.1} parent=1 // pred_check
      _
    $region27: #{_forward.1} parent=1 // pred_check_branch
      %178 = sbr.rel (0) target = $region29
    $region28: #{_forward.1} parent=1 // pred_region
      _
    $region29: #{_forward.1} parent=1 // pred_fallthru
      _
    // Predicated region
    $region30: #{_forward.1} parent=1 // pred_check
      _
    $region31: #{_forward.1} parent=1 // pred_check_branch
      %180 = sbr.rel (0) target = $region33
    $region32: #{_forward.1} parent=1 // pred_region
      _
    $region33: #{_forward.1} parent=1 // pred_fallthru
      _
    %181 = vsyncpa [#allocation3], 1

</llo_original>
